<compile_context>
chip_gen: v5e
topology: v5e:2x2
jax: 0.10.0
libtpu: 0.0.40
codegen_flags: <defaults>
</compile_context>

<pallas_src>
import functools
import math

import jax
import jax.numpy as jnp
from jax import lax
from jax.experimental import pallas as pl
from jax.experimental.pallas import tpu as pltpu

_MIB = 1024 * 1024


# ---------------------------------------------------------------------------
# Hardware introspection / tiling helpers
# ---------------------------------------------------------------------------

def _physical_vmem_bytes():
    """Physical VMEM per core; conservative (v7x = 64 MiB) if introspection fails."""
    try:
        return int(pltpu.get_tpu_info().vmem_capacity_bytes)
    except Exception:
        return 64 * _MIB


def _clamp_vmem_limit(nbytes):
    phys = _physical_vmem_bytes()
    limit = max(int(nbytes), 32 * _MIB)       # never below the usual scoped default
    return min(limit, phys - 16 * _MIB)       # leave headroom for compiler-internal scratch


def _pick_tile(dim, candidates):
    # Largest MXU/lane-aligned tile that evenly divides `dim`.
    for c in candidates:
        if dim >= c and dim % c == 0:
            return c
    # TODO(synk): ragged (non-divisible) M/N/K tiling with masked edge blocks; for now fall
    # back to the full dimension (single block, always a legal BlockSpec).
    return dim


# ---------------------------------------------------------------------------
# Tiled linear: y = x @ W [+ b], K-reduction accumulator in VMEM scratch
# ---------------------------------------------------------------------------

def _matmul_kernel(x_ref, w_ref, o_ref, acc_ref):
    @pl.when(pl.program_id(2) == 0)
    def _init():
        acc_ref[...] = jnp.zeros_like(acc_ref)

    acc_ref[...] += jnp.dot(x_ref[...], w_ref[...],
                            preferred_element_type=jnp.float32)

    @pl.when(pl.program_id(2) == pl.num_programs(2) - 1)
    def _store():
        o_ref[...] = acc_ref[...].astype(o_ref.dtype)


def _matmul_bias_kernel(x_ref, w_ref, b_ref, o_ref, acc_ref):
    @pl.when(pl.program_id(2) == 0)
    def _init():
        acc_ref[...] = jnp.zeros_like(acc_ref)

    acc_ref[...] += jnp.dot(x_ref[...], w_ref[...],
                            preferred_element_type=jnp.float32)

    @pl.when(pl.program_id(2) == pl.num_programs(2) - 1)
    def _store():
        o_ref[...] = (acc_ref[...] + b_ref[...].astype(jnp.float32)
                      ).astype(o_ref.dtype)


def linear(x2d, w, b=None):
    """y = x2d @ w (+ b). Bias is skipped at trace time when b is None (qkv_bias=False)."""
    M, K = x2d.shape
    Kw, Nout = w.shape
    assert K == Kw
    itemsize = jnp.dtype(x2d.dtype).itemsize

    # Generation-aware tiles: deeper K reduction on 128-MiB-VMEM parts (v5e/v6e); tm/tn are
    # kept <= 512 everywhere since the (tm, tn) f32 accumulator + output must also fit v7x.
    big_vmem = _physical_vmem_bytes() >= 100 * _MIB
    mn_candidates = (512, 256, 128)
    k_candidates = (1024, 512, 256, 128) if big_vmem else (512, 256, 128)
    tm = _pick_tile(M, mn_candidates)
    tn = _pick_tile(Nout, mn_candidates)
    tk = _pick_tile(K, k_candidates)
    grid = (M // tm, Nout // tn, K // tk)

    # Double-buffered x/w/o blocks + f32 accumulator (+ bias).
    est = 2 * (tm * tk + tk * tn + tm * tn) * itemsize + tm * tn * 4
    if b is not None:
        est += 2 * tn * itemsize
    cp = pltpu.CompilerParams(
        dimension_semantics=("parallel", "parallel", "arbitrary"),
        vmem_limit_bytes=_clamp_vmem_limit(int(1.5 * est)))

    x_spec = pl.BlockSpec((tm, tk), lambda i, j, k: (i, k))
    w_spec = pl.BlockSpec((tk, tn), lambda i, j, k: (k, j))
    o_spec = pl.BlockSpec((tm, tn), lambda i, j, k: (i, j))
    scratch = [pltpu.VMEM((tm, tn), jnp.float32)]

    if b is None:
        return pl.pallas_call(
            _matmul_kernel,
            out_shape=jax.ShapeDtypeStruct((M, Nout), x2d.dtype),
            grid=grid,
            in_specs=[x_spec, w_spec],
            out_specs=o_spec,
            scratch_shapes=scratch,
            compiler_params=cp,
        )(x2d, w)

    b_spec = pl.BlockSpec((1, tn), lambda i, j, k: (0, j))
    return pl.pallas_call(
        _matmul_bias_kernel,
        out_shape=jax.ShapeDtypeStruct((M, Nout), x2d.dtype),
        grid=grid,
        in_specs=[x_spec, w_spec, b_spec],
        out_specs=o_spec,
        scratch_shapes=scratch,
        compiler_params=cp,
    )(x2d, w, b.reshape(1, Nout))


# ---------------------------------------------------------------------------
# Fused attention + head-merge + output projection (one grid step per batch)
# ---------------------------------------------------------------------------

def _attn_proj_kernel(q_ref, k_ref, v_ref, wp_ref, bp_ref, o_ref, merged_ref, *, scale):
    # q/k/v refs: (N, H, Dh) for one batch element; wp: (C, C); bp: (1, C);
    # o: (N, C); merged: (N, C) f32 VMEM scratch holding concat_h(softmax(q_h k_h^T) v_h).
    _, num_heads, head_dim = q_ref.shape

    for h in range(num_heads):                   # static loop: static offsets everywhere
        # TODO(synk): emit qkv head-major (or require Dh % 128 == 0) so this head extract
        # becomes a clean lane slice / 2-D block instead of a sublane-strided read.
        # Note: when running bf16 operands, folding `scale` into q loses a hair of precision
        # vs scaling the f32 scores (negligible; keeps the multiply O(N*Dh)).
        q = q_ref[:, h, :] * scale
        k = k_ref[:, h, :]
        v = v_ref[:, h, :]
        # q @ k^T without materializing k.T: contract both operands on their Dh axis
        # (native dtype into the MXU, f32 accumulation).
        s = lax.dot_general(q, k, (((1,), (1,)), ((), ())),
                            preferred_element_type=jnp.float32)          # (N, N) f32
        s = s - jnp.max(s, axis=-1, keepdims=True)
        p = jnp.exp(s)                                                    # f32 softmax (v5e-safe)
        l = jnp.sum(p, axis=-1, keepdims=True)                            # (N, 1)
        r = pl.reciprocal(l, approx=True)                                 # EUP slot
        r = r * (2.0 - l * r)                                             # one Newton step: ~exact 1/l
        o_h = jnp.dot(p.astype(v.dtype), v,
                      preferred_element_type=jnp.float32)                 # (N, Dh), unnormalized
        # Normalize AFTER the PV matmul (O(N*Dh) multiplies, not O(N^2)) and park this head's
        # output in the persistent VMEM scratch at a static column offset: no (N, C) value is
        # carried in vregs across the unrolled loop (no spill pressure).
        merged_ref[:, h * head_dim:(h + 1) * head_dim] = o_h * r

    # ONE full-depth (K = C) output projection + bias, then a lane-dense (N, C) store.
    merged = merged_ref[...].astype(wp_ref.dtype)
    out = jnp.dot(merged, wp_ref[...], preferred_element_type=jnp.float32)   # (N, C) f32
    o_ref[...] = (out + bp_ref[...].astype(jnp.float32)).astype(o_ref.dtype)
    # TODO(synk): flash-style KV/query tiling (online-softmax m/l/acc scratch) for long N —
    # the (N, N) f32 score and full-sequence blocks do not scale to v7x's 64 MiB VMEM.


def _build_attn_call(B, N, C, H, Dh, in_dtype, out_dtype, scale, single_buffer_weights):
    kern = functools.partial(_attn_proj_kernel, scale=scale)
    itemsize = jnp.dtype(in_dtype).itemsize

    def qkv_spec(slot):
        # Read q/k/v directly out of the (B, N, 3, H, Dh) qkv view: fixed 0/1/2 index on the
        # "3" axis, size-1 dims squeezed away -> kernel sees (N, H, Dh). No XLA transpose /
        # extra HBM round trip of the qkv activation; last two block dims are full dims.
        return pl.BlockSpec((None, N, None, H, Dh), lambda b, s=slot: (b, 0, s, 0, 0))

    w_kwargs = {}
    if single_buffer_weights:
        # Constant index_map -> never refetched; keep a single VMEM buffer instead of two.
        w_kwargs = dict(pipeline_mode=pl.Buffered(1))

    in_specs = [
        qkv_spec(0), qkv_spec(1), qkv_spec(2),
        pl.BlockSpec((C, C), lambda b: (0, 0), **w_kwargs),   # resident projection weight
        pl.BlockSpec((1, C), lambda b: (0, 0), **w_kwargs),   # resident projection bias (f32)
    ]

    # Explicit VMEM budget for this block set (biggest measured perf lever to get right).
    w_bufs = 1 if single_buffer_weights else 2
    est = ((2 * 3 * N * H * Dh + 2 * N * C + w_bufs * C * C) * itemsize   # pipelined blocks
           + 2 * C * 4                                                     # bias (f32)
           + N * C * 4                                                     # merged scratch
           + 2 * N * N * 4)                                                # per-head score + exp
    cp = pltpu.CompilerParams(
        dimension_semantics=("parallel",),                 # batch axis shardable across TCs
        vmem_limit_bytes=_clamp_vmem_limit(int(1.25 * est) + 4 * _MIB))

    return pl.pallas_call(
        kern,
        out_shape=jax.ShapeDtypeStruct((B, N, C), out_dtype),
        grid=(B,),
        in_specs=in_specs,
        out_specs=pl.BlockSpec((None, N, C), lambda b: (b, 0, 0)),
        scratch_shapes=[pltpu.VMEM((N, C), jnp.float32)],
        compiler_params=cp,
    )


def attention_proj(qkv5, w_proj, b_proj, *, scale, out_dtype):
    B, N, _, H, Dh = qkv5.shape
    C = H * Dh
    args = (qkv5, qkv5, qkv5, w_proj, b_proj.reshape(1, C).astype(jnp.float32))
    try:
        # Preferred: single-buffered resident projection weight/bias (saves C*C*dtype VMEM).
        return _build_attn_call(B, N, C, H, Dh, qkv5.dtype, out_dtype, scale, True)(*args)
    except Exception:
        # Fallback for JAX builds without BlockSpec pipeline_mode / pl.Buffered support.
        return _build_attn_call(B, N, C, H, Dh, qkv5.dtype, out_dtype, scale, False)(*args)


# ---------------------------------------------------------------------------
# QAttention forward (train path): Identity q/k norm, dropout = 0
# ---------------------------------------------------------------------------

def qattention_forward(x, params, num_heads, compute_dtype=None):
    """Forward of QAttention's train path.

    compute_dtype: optionally run the MXU paths with lower-precision operands (e.g.
    jnp.bfloat16) and f32 accumulation; the result is cast back to x.dtype in-kernel.
    """
    B, N, C = x.shape
    assert C % num_heads == 0
    Dh = C // num_heads
    scale = float(Dh) ** -0.5     # MulShift attn_scale with scale=head_dim^-0.5, shift=0

    cdt = compute_dtype if compute_dtype is not None else x.dtype
    xc = x.astype(cdt)
    w_qkv = params["w_qkv"].astype(cdt)
    w_proj = params["w_proj"].astype(cdt)

    # QKV projection (qkv_bias=False -> no bias input, no bias add at trace time).
    qkv = linear(xc.reshape(B * N, C), w_qkv)            # (B*N, 3C), compute dtype
    # Trailing-dims-only reshape: free, no transpose, no HBM round trip.
    qkv5 = qkv.reshape(B, N, 3, num_heads, Dh)
    # Fused attention + head-merge + output projection (+ proj bias).
    return attention_proj(qkv5, w_proj, params["b_proj"], scale=scale, out_dtype=x.dtype)
    # TODO(synk): evalFunc (quantized BatchHeadIntMatMul/FloatMatMul int8 path) is not
    # implemented; note v7x's MXU has no int8, so that port needs fp8 or dequant-to-bf16.


# ---------------------------------------------------------------------------
# Pure-JAX reference for sanity checking
# ---------------------------------------------------------------------------

def qattention_ref(x, params, num_heads):
    B, N, C = x.shape
    Dh = C // num_heads
    scale = Dh ** (-0.5)
    qkv = x.reshape(B * N, C) @ params["w_qkv"]
    qkv = qkv.reshape(B, N, 3, num_heads, Dh).transpose(2, 0, 3, 1, 4)
    q, k, v = qkv[0], qkv[1], qkv[2]
    s = jnp.einsum("bhnd,bhmd->bhnm", q, k) * scale
    p = jax.nn.softmax(s, axis=-1)
    o = jnp.einsum("bhnm,bhmd->bhnd", p, v)
    o = o.transpose(0, 2, 1, 3).reshape(B * N, C)
    o = o @ params["w_proj"] + params["b_proj"]
    return o.reshape(B, N, C)


# ---------------------------------------------------------------------------
# main
# ---------------------------------------------------------------------------

if __name__ == "__main__":
    # Small shapes consistent with the module: batch=2, tokens N=8, dim C=32, 4 heads (Dh=8).
    B, N, C, H = 2, 8, 32, 4

    key = jax.random.PRNGKey(0)
    k_x, k_wqkv, k_wproj, k_bproj = jax.random.split(key, 4)

    x = jax.random.normal(k_x, (B, N, C), dtype=jnp.float32)

    # Deterministic synthetic parameters; weights stored as (in_features, out_features).
    params = {
        "w_qkv":  jax.random.normal(k_wqkv,  (C, 3 * C), dtype=jnp.float32) / math.sqrt(C),
        "w_proj": jax.random.normal(k_wproj, (C, C),     dtype=jnp.float32) / math.sqrt(C),
        "b_proj": jax.random.normal(k_bproj, (C,),       dtype=jnp.float32) * 0.01,
    }

    ref = qattention_ref(x, params, num_heads=H)

    # f32 path (matches the module's numerics; Newton-corrected reciprocal -> tight check).
    out = jax.block_until_ready(qattention_forward(x, params, num_heads=H))
    assert out.shape == (B, N, C)
    assert jnp.allclose(out, ref, atol=5e-3, rtol=5e-3), "f32 kernel mismatch vs reference"

    # bf16 MXU-operand path (f32 accumulation, output cast back to f32): loose tolerance.
    out_bf16 = jax.block_until_ready(
        qattention_forward(x, params, num_heads=H, compute_dtype=jnp.bfloat16))
    assert out_bf16.shape == (B, N, C)
    assert jnp.allclose(out_bf16, ref, atol=1e-1, rtol=1e-1), "bf16 kernel mismatch vs reference"

    print("KERNEL_OK")
</pallas_src>

<mosaic_0001>
module attributes {stable_mosaic.version = 11 : i64} {
  func.func @_matmul_kernel(%arg0: i32, %arg1: i32, %arg2: i32, %arg3: memref<16x32xf32, #tpu.memory_space<vmem>>, %arg4: memref<32x96xf32, #tpu.memory_space<vmem>>, %arg5: memref<16x96xf32, #tpu.memory_space<vmem>>, %arg6: memref<16x96xf32, #tpu.memory_space<vmem>>) attributes {dimension_semantics = [#tpu.dimension_semantics<parallel>, #tpu.dimension_semantics<parallel>, #tpu.dimension_semantics<arbitrary>], iteration_bounds = array<i64: 1, 1, 1>, scalar_prefetch = 0 : i64, scratch_operands = 1 : i64, tpu.core_type = #tpu.core_type<tc>, window_params = [{transform_indices = @transform_0, window_bounds = array<i64: 16, 32>}, {transform_indices = @transform_1, window_bounds = array<i64: 32, 96>}, {transform_indices = @transform_2, window_bounds = array<i64: 16, 96>}]} {
    %c0_i32 = arith.constant 0 : i32
    %0 = arith.cmpi eq, %arg2, %c0_i32 : i32
    %1 = arith.extui %0 : i1 to i32
    %c0_i32_0 = arith.constant 0 : i32
    %2 = arith.cmpi ne, %1, %c0_i32_0 : i32
    scf.if %2 {
      %cst_10 = arith.constant 0.000000e+00 : f32
      %12 = vector.broadcast %cst_10 : f32 to vector<16x96xf32>
      %c0_11 = arith.constant 0 : index
      %c0_12 = arith.constant 0 : index
      %13 = vector.load %arg6[%c0_11, %c0_12] : memref<16x96xf32, #tpu.memory_space<vmem>>, vector<16x96xf32>
      tpu.vector_store %arg6[%c0_11, %c0_12], %12 {strides = array<i32>} : memref<16x96xf32, #tpu.memory_space<vmem>>, vector<16x96xf32>,
    } else {
    }
    %c0 = arith.constant 0 : index
    %c0_1 = arith.constant 0 : index
    %3 = vector.load %arg6[%c0, %c0_1] : memref<16x96xf32, #tpu.memory_space<vmem>>, vector<16x96xf32>
    %c0_2 = arith.constant 0 : index
    %c0_3 = arith.constant 0 : index
    %4 = vector.load %arg3[%c0_2, %c0_3] : memref<16x32xf32, #tpu.memory_space<vmem>>, vector<16x32xf32>
    %c0_4 = arith.constant 0 : index
    %c0_5 = arith.constant 0 : index
    %5 = vector.load %arg4[%c0_4, %c0_5] : memref<32x96xf32, #tpu.memory_space<vmem>>, vector<32x96xf32>
    %cst = arith.constant dense<0.000000e+00> : vector<16x96xf32>
    %6 = tpu.matmul %4, %5, %cst {dimension_numbers = #tpu.dot_dimension_numbers<[1], [0], [0], [1], [0, 0, 1, 1], [], []>} : vector<16x32xf32>, vector<32x96xf32>, vector<16x96xf32> -> vector<16x96xf32>
    %7 = arith.addf %3, %6 : vector<16x96xf32>
    %c0_6 = arith.constant 0 : index
    %c0_7 = arith.constant 0 : index
    %8 = vector.load %arg6[%c0_6, %c0_7] : memref<16x96xf32, #tpu.memory_space<vmem>>, vector<16x96xf32>
    tpu.vector_store %arg6[%c0_6, %c0_7], %7 {strides = array<i32>} : memref<16x96xf32, #tpu.memory_space<vmem>>, vector<16x96xf32>,
    %c0_i32_8 = arith.constant 0 : i32
    %9 = arith.cmpi eq, %arg2, %c0_i32_8 : i32
    %10 = arith.extui %9 : i1 to i32
    %c0_i32_9 = arith.constant 0 : i32
    %11 = arith.cmpi ne, %10, %c0_i32_9 : i32
    scf.if %11 {
      %c0_10 = arith.constant 0 : index
      %c0_11 = arith.constant 0 : index
      %12 = vector.load %arg6[%c0_10, %c0_11] : memref<16x96xf32, #tpu.memory_space<vmem>>, vector<16x96xf32>
      %c0_12 = arith.constant 0 : index
      %c0_13 = arith.constant 0 : index
      %13 = vector.load %arg5[%c0_12, %c0_13] : memref<16x96xf32, #tpu.memory_space<vmem>>, vector<16x96xf32>
      tpu.vector_store %arg5[%c0_12, %c0_13], %12 {strides = array<i32>} : memref<16x96xf32, #tpu.memory_space<vmem>>, vector<16x96xf32>,
    } else {
    }
    return
  }
  func.func @transform_0(%arg0: i32, %arg1: i32, %arg2: i32) -> (i32, i32) {
    %c0_i32 = arith.constant 0 : i32
    return %arg0, %arg2 : i32, i32
  }
  func.func @transform_1(%arg0: i32, %arg1: i32, %arg2: i32) -> (i32, i32) {
    %c0_i32 = arith.constant 0 : i32
    return %arg2, %arg1 : i32, i32
  }
  func.func @transform_2(%arg0: i32, %arg1: i32, %arg2: i32) -> (i32, i32) {
    %c0_i32 = arith.constant 0 : i32
    return %arg0, %arg1 : i32, i32
  }
}

</mosaic_0001>

<llo_original>
// kernel: tpu_custom_call.1
$region0: #{tpu_custom_call.1}
  #allocation0 [shape = 'u32[]', space=smem, size = 0x4, offset = 0x4, fixed_abs, tag = 'smem constant byte address 0x4 - core index']
  #allocation1 [shape = 'u32[72,128]{1,0:T(1,128)}', space=vmem, size = 0x9000, scoped, tag = 'internal scratch']
  #allocation2 [shape = 'f32[16,96]{1,0:T(8,128)}', space=vmem, size = 0x2000, scoped, tag = 'scratch operand']
  %s0 = inlined_call_operand.hbm [shape: f32[16,32], index: 0, kind: input, shape index: {}]
  %s1 = inlined_call_operand.hbm [shape: f32[32,96], index: 1, kind: input, shape index: {}]
  %s2 = inlined_call_operand.hbm [shape: f32[16,96], index: 2, kind: output, shape index: {}]
  %s3 = sld [smem:[#allocation0]]
  $region34: #{tpu_custom_call.1} parent=0
    _
  %s5 = ssub.s32 1, %s3
  %s6 = scalar_select 0, %s5, %s3
  $region1: #{tpu_custom_call.1} parent=0
    #allocation3 [shape = 'u8[8192]{0}', space=vmem, size = 0x2000, scoped, tag = 'input window, operand 0, single buffered']
    #allocation4 [shape = 's32[1]{0}', space=sflag, size = 0x4, scoped, tag = 'scoped memory for tpu_custom_call.1']
    #allocation5 [shape = 's32[1]{0}', space=sflag, size = 0x4, scoped, tag = 'scoped memory for tpu_custom_call.1']
    #allocation6 [shape = 'u8[16384]{0}', space=vmem, size = 0x4000, scoped, tag = 'input window, operand 1, single buffered']
    #allocation7 [shape = 's32[1]{0}', space=sflag, size = 0x4, scoped, tag = 'scoped memory for tpu_custom_call.1']
    #allocation8 [shape = 'u8[8192]{0}', space=vmem, size = 0x2000, scoped, tag = 'output window, operand 0, single buffered']
    %7 = vsyncpa [#allocation4], 0
    %8 = vsyncpa [#allocation7], 0
    %9 = vsyncpa [#allocation5], 0
    // Predicated region
    $region2: #{tpu_custom_call.1} parent=1 // pred_check
      _
    $region3: #{tpu_custom_call.1} parent=1 // pred_check_branch
      %11 = sbr.rel (0) target = $region5
    $region4: #{tpu_custom_call.1} parent=1 // pred_region
      %13 = vsyncadd [#allocation4], 0
      %s14 = sshll.u32 %s0, 4
      %s15 = int_to_ptr.hbm [resolvable:$true] %s14
      %s16 = sshll.u32 [#allocation3], 4
      %s17 = int_to_ptr.vmem [resolvable:$true] %s16
      %22 = dma.hbm_to_vmem [thread:$0]  %s15, 256, %s17, [#allocation4], 128, 128, 8
    $region5: #{tpu_custom_call.1} parent=1 // pred_fallthru
      _
    // Predicated region
    $region6: #{tpu_custom_call.1} parent=1 // pred_check
      _
    $region7: #{tpu_custom_call.1} parent=1 // pred_check_branch
      %24 = sbr.rel (0) target = $region9
    $region8: #{tpu_custom_call.1} parent=1 // pred_region
      %26 = vsyncadd [#allocation7], 0
      %s27 = sshll.u32 %s1, 4
      %s28 = int_to_ptr.hbm [resolvable:$true] %s27
      %s29 = sshll.u32 [#allocation6], 4
      %s30 = int_to_ptr.vmem [resolvable:$true] %s29
      %35 = dma.hbm_to_vmem [thread:$0]  %s28, 512, %s30, [#allocation7], 128, 128, 8
    $region9: #{tpu_custom_call.1} parent=1 // pred_fallthru
      _
    // Predicated region
    $region10: #{tpu_custom_call.1} parent=1 // pred_check
      _
    $region11: #{tpu_custom_call.1} parent=1 // pred_check_branch
      %37 = sbr.rel (0) target = $region13
    $region12: #{tpu_custom_call.1} parent=1 // pred_region
      %39 = dma.done [#allocation4], 256
    $region13: #{tpu_custom_call.1} parent=1 // pred_fallthru
      _
    // Predicated region
    $region14: #{tpu_custom_call.1} parent=1 // pred_check
      _
    $region15: #{tpu_custom_call.1} parent=1 // pred_check_branch
      %41 = sbr.rel (0) target = $region17
    $region16: #{tpu_custom_call.1} parent=1 // pred_region
      %43 = dma.done [#allocation7], 512
    $region17: #{tpu_custom_call.1} parent=1 // pred_fallthru
      _
    %p44 = scmp.eq.s32.totalorder 0, 0
    // Predicated region
    $region18: #{tpu_custom_call.1} parent=1 // pred_check
      %p45 = pneg %p44
    $region19: #{tpu_custom_call.1} parent=1 // pred_check_branch
      %47 = sbr.rel (%p45) target = $region21
    $region20: #{tpu_custom_call.1} parent=1 // pred_region
      %vm48 = vcmask 785408
      %49 = vst.msk [vmem:[#allocation2] sm:$0xff] %vm48, 0.0
      %50 = vst.msk [vmem:[#allocation2 + $0x8] sm:$0xff] %vm48, 0.0
    $region21: #{tpu_custom_call.1} parent=1 // pred_fallthru
      _
    %v51 = vld [vmem:[#allocation2] sm:$0xff]
    %v52 = vld [vmem:[#allocation2 + $0x8] sm:$0xff]
    %v53 = vld [vmem:[#allocation3] sm:$0xff]
    %v54 = vld [vmem:[#allocation3 + $0x8] sm:$0xff]
    %v55 = vld [vmem:[#allocation6] sm:$0xff]
    %v56 = vld [vmem:[#allocation6 + $0x8] sm:$0xff]
    %v57 = vld [vmem:[#allocation6 + $0x10] sm:$0xff]
    %v58 = vld [vmem:[#allocation6 + $0x18] sm:$0xff]
    %vm59 = vcmask 261120
    %v61 = vsel %vm59, %v53, 0
    %v64 = vsel %vm59, %v54, 0
    %66 = vmatpush.msra.mxu0 0.0
    %67 = vmatpush.msra.mxu0 0.0
    %68 = vmatpush.msra.mxu0 0.0
    %69 = vmatpush.msra.mxu0 0.0
    %70 = vmatpush.msra.mxu0 0.0
    %71 = vmatpush.msra.mxu0 0.0
    %72 = vmatpush.msra.mxu0 0.0
    %73 = vmatpush.msra.mxu0 0.0
    %74 = vmatpush.msra.mxu0 0.0
    %75 = vmatpush.msra.mxu0 0.0
    %76 = vmatpush.msra.mxu0 0.0
    %77 = vmatpush.msra.mxu0 0.0
    %78 = vmatpush.msra.mxu0 %v58
    %79 = vmatpush.msra.mxu0 %v57
    %80 = vmatpush.msra.mxu0 %v56
    %81 = vmatpush.msra.mxu0 %v55
    %82 = vmatmul.f32.gmra.mxu0 %v61
    %v83 = vpop.f32.mrf.mxu0
    %v84 = vadd.f32 0.0, %v83
    %85 = vmatmul.f32.gmra.mxu0 %v64
    %v86 = vpop.f32.mrf.mxu0
    %v87 = vadd.f32 0.0, %v86
    %88 = vdwg.mxu0
    %v89 = vadd.f32 %v51, %v84
    %v90 = vadd.f32 %v52, %v87
    %vm91 = vcmask 785408
    %92 = vst.msk [vmem:[#allocation2] sm:$0xff] %vm91, %v89
    %93 = vst.msk [vmem:[#allocation2 + $0x8] sm:$0xff] %vm91, %v90
    // Predicated region
    $region22: #{tpu_custom_call.1} parent=1 // pred_check
      %p94 = pneg %p44
    $region23: #{tpu_custom_call.1} parent=1 // pred_check_branch
      %96 = sbr.rel (%p94) target = $region25
    $region24: #{tpu_custom_call.1} parent=1 // pred_region
      %v97 = vld [vmem:[#allocation2] sm:$0xff]
      %v98 = vld [vmem:[#allocation2 + $0x8] sm:$0xff]
      %99 = vst.msk [vmem:[#allocation8] sm:$0xff] %vm91, %v97
      %100 = vst.msk [vmem:[#allocation8 + $0x8] sm:$0xff] %vm91, %v98
    $region25: #{tpu_custom_call.1} parent=1 // pred_fallthru
      _
    // Predicated region
    $region26: #{tpu_custom_call.1} parent=1 // pred_check
      _
    $region27: #{tpu_custom_call.1} parent=1 // pred_check_branch
      %102 = sbr.rel (0) target = $region29
    $region28: #{tpu_custom_call.1} parent=1 // pred_region
      %104 = vsyncadd [#allocation5], 0
      %s105 = sshll.u32 [#allocation8], 4
      %s106 = int_to_ptr.vmem [resolvable:$true] %s105
      %s107 = sshll.u32 %s2, 4
      %s108 = int_to_ptr.hbm [resolvable:$true] %s107
      %113 = dma.vmem_to_hbm [thread:$0]  %s106, 256, %s108, [#allocation5], 128, 128, 8
    $region29: #{tpu_custom_call.1} parent=1 // pred_fallthru
      _
    // Predicated region
    $region30: #{tpu_custom_call.1} parent=1 // pred_check
      _
    $region31: #{tpu_custom_call.1} parent=1 // pred_check_branch
      %115 = sbr.rel (0) target = $region33
    $region32: #{tpu_custom_call.1} parent=1 // pred_region
      %117 = dma.done [#allocation5], 256
    $region33: #{tpu_custom_call.1} parent=1 // pred_fallthru
      _
    %118 = vsyncpa [#allocation4], 1
    %119 = vsyncpa [#allocation7], 1
    %120 = vsyncpa [#allocation5], 1

</llo_original>
